<compile_context>
chip_gen: v5e
topology: v5e:2x2
jax: 0.10.0
libtpu: 0.0.40
codegen_flags: <defaults>
</compile_context>

<pallas_src>
import jax
import jax.numpy as jnp
from jax.experimental import pallas as pl
from jax.experimental.pallas import tpu as pltpu


LANE = 128  # lane width; final fc output is padded to this many columns


# ---------------------------------------------------------------- kernel ----

def _gat_layer(x, mask_bias, waug_ref, b_ref):
    """One GATConv (heads=1, concat=True) + fused ReLU, fully VMEM-resident.

    waug_ref holds [W | W @ a_dst^T | W @ a_src^T]  -> shape (D, F + 2).
    """
    f = b_ref.shape[-1]
    xb = x.astype(jnp.bfloat16)

    # single MXU matmul: h (N, F) plus e_dst / e_src columns (N, 2)
    h_aug = jnp.dot(xb, waug_ref[...], preferred_element_type=jnp.float32)  # (N, F+2)
    h = h_aug[:, :f].astype(jnp.bfloat16)                                   # (N, F)
    e_dst = h_aug[:, f:f + 1]                                               # (N, 1) f32
    # tiny (N,1) -> (1,N) relayout on the XLU (free slot), no matmul needed
    e_src = jnp.transpose(h_aug[:, f + 1:f + 2])                            # (1, N) f32

    raw = e_dst + e_src                                                     # (N, N)
    leaky = jnp.maximum(raw, 0.2 * raw)                                     # LeakyReLU(0.2)
    score = leaky + mask_bias                                               # bf16 bias promotes lane-wise

    # row-wise softmax over source nodes j; self-loops guarantee denom >= 1
    m = jnp.max(score, axis=-1, keepdims=True)
    p = jnp.exp(score - m)
    denom = jnp.sum(p, axis=-1, keepdims=True)
    alpha = p * pl.reciprocal(denom, approx=True)

    # aggregate + bias, fused ReLU (model applies F.relu(conv(x)));
    # dropout == identity in eval mode.
    agg = jnp.dot(alpha.astype(jnp.bfloat16), h,
                  preferred_element_type=jnp.float32) + b_ref[...]
    return jnp.maximum(agg, 0.0)


def gat_model_kernel(x_ref, adj_ref,
                     w1_ref, b1_ref,
                     w2_ref, b2_ref,
                     wfc_ref, bfc_ref, o_ref):
    # int8 adjacency -> additive bf16 bias: 0 on edges, -1e30 off edges.
    # Computed once, reused by both layers; stays bf16 (no f32 (N,N) copy).
    mask_bias = (adj_ref[...].astype(jnp.bfloat16) - 1.0) * 1e30            # (N, N) bf16

    h = _gat_layer(x_ref[...], mask_bias, w1_ref, b1_ref)
    h = _gat_layer(h, mask_bias, w2_ref, b2_ref)

    out = jnp.dot(h.astype(jnp.bfloat16), wfc_ref[...],
                  preferred_element_type=jnp.float32) + bfc_ref[...]
    o_ref[...] = out                                                        # (N, LANE)


# --------------------------------------------------------------- wrapper ----

def _fold_attention(w, adst, asrc, dtype=jnp.bfloat16):
    """Fold a_dst / a_src into the projection: (D,F),(1,F),(1,F) -> (D,F+2)."""
    col_dst = w @ adst.T                                                    # (D, 1)
    col_src = w @ asrc.T                                                    # (D, 1)
    return jnp.concatenate([w, col_dst, col_src], axis=1).astype(dtype)


def gat_model_forward(x, adj, params):
    N, D = x.shape
    hidden = params["wfc"].shape[0]
    output_dim = params["wfc"].shape[1]
    bf16 = jnp.bfloat16

    # smallest O(N^2) HBM operand: 0/1 adjacency as int8, expanded in-kernel
    adj_i8 = (adj > 0).astype(jnp.int8)

    # MXU-facing operands in bf16; biases stay f32.
    x_bf = x.astype(bf16)
    w1 = _fold_attention(params["w1"], params["adst1"], params["asrc1"])    # (D, F+2)
    w2 = _fold_attention(params["w2"], params["adst2"], params["asrc2"])    # (F, F+2)
    b1 = params["b1"]
    b2 = params["b2"]

    # lane-dense final output: pad fc weights/bias to LANE columns, write an
    # (N, LANE) slab from the kernel, slice here.
    wfc = jnp.zeros((hidden, LANE), bf16).at[:, :output_dim].set(
        params["wfc"].astype(bf16))
    bfc = jnp.zeros((1, LANE), jnp.float32).at[:, :output_dim].set(
        params["bfc"])

    F = hidden
    flops = (2 * N * D * (F + 2) + 2 * N * N * F          # layer 1
             + 2 * N * F * (F + 2) + 2 * N * N * F        # layer 2
             + 2 * N * F * LANE                           # fc
             + 10 * N * N)                                # softmax elementwise
    transcendentals = 2 * N * N                           # exp per layer
    bytes_accessed = (N * D * 2 + N * N                   # x, adjacency
                      + D * (F + 2) * 2 + F * (F + 2) * 2 # folded weights
                      + 2 * F * 4                         # biases
                      + F * LANE * 2 + LANE * 4           # fc
                      + N * LANE * 4)                     # output slab

    vmem = pl.BlockSpec(memory_space=pltpu.MemorySpace.VMEM)
    out = pl.pallas_call(
        gat_model_kernel,
        out_shape=jax.ShapeDtypeStruct((N, LANE), jnp.float32),
        in_specs=[vmem] * 8,
        out_specs=vmem,
        compiler_params=pltpu.CompilerParams(vmem_limit_bytes=32 * 1024 * 1024),
        cost_estimate=pl.CostEstimate(flops=flops,
                                      transcendentals=transcendentals,
                                      bytes_accessed=bytes_accessed),
    )(x_bf, adj_i8, w1, b1, w2, b2, wfc, bfc)
    return out[:, :output_dim]


# --------------------------------------------------------- pure-JAX check ---

def gat_reference(x, adj, params):
    def layer(h_in, w, asrc, adst, b):
        h = h_in @ w
        e_dst = h @ adst.T                                # (N, 1)
        e_src = h @ asrc.T                                # (N, 1)
        raw = e_dst + e_src.T
        leaky = jnp.where(raw > 0, raw, 0.2 * raw)
        score = jnp.where(adj > 0, leaky, -jnp.inf)
        alpha = jax.nn.softmax(score, axis=-1)
        return jax.nn.relu(alpha @ h + b)

    h = layer(x, params["w1"], params["asrc1"], params["adst1"], params["b1"])
    h = layer(h, params["w2"], params["asrc2"], params["adst2"], params["b2"])
    return h @ params["wfc"] + params["bfc"]


# ------------------------------------------------------------------- main ---

if __name__ == "__main__":
    N = 16            # number of nodes
    input_dim = 8
    hidden_dim = 32
    output_dim = 4
    num_heads = 1     # module default

    key = jax.random.PRNGKey(0)
    ks = jax.random.split(key, 10)

    # node features
    x = jax.random.normal(ks[0], (N, input_dim), dtype=jnp.float32)

    # deterministic edge_index: ring edges i->(i+1)%N and skip edges i->(i+3)%N
    src = jnp.concatenate([jnp.arange(N), jnp.arange(N)])
    dst = jnp.concatenate([(jnp.arange(N) + 1) % N, (jnp.arange(N) + 3) % N])
    # dense adjacency mask A[dst, src] = 1, plus self-loops (PyG default)
    adj = jnp.zeros((N, N), dtype=jnp.float32)
    adj = adj.at[dst, src].set(1.0)
    adj = jnp.minimum(adj + jnp.eye(N, dtype=jnp.float32), 1.0)

    sc = 0.1
    params = {
        # GATConv 1: Linear(input_dim, hidden_dim), att_src/att_dst (1, hidden)
        "w1":    sc * jax.random.normal(ks[1], (input_dim, hidden_dim * num_heads), jnp.float32),
        "asrc1": sc * jax.random.normal(ks[2], (1, hidden_dim * num_heads), jnp.float32),
        "adst1": sc * jax.random.normal(ks[3], (1, hidden_dim * num_heads), jnp.float32),
        "b1":    sc * jax.random.normal(ks[4], (1, hidden_dim * num_heads), jnp.float32),
        # GATConv 2: Linear(hidden_dim*heads, hidden_dim)
        "w2":    sc * jax.random.normal(ks[5], (hidden_dim * num_heads, hidden_dim * num_heads), jnp.float32),
        "asrc2": sc * jax.random.normal(ks[6], (1, hidden_dim * num_heads), jnp.float32),
        "adst2": sc * jax.random.normal(ks[7], (1, hidden_dim * num_heads), jnp.float32),
        "b2":    sc * jax.random.normal(ks[8], (1, hidden_dim * num_heads), jnp.float32),
        # fc: Linear(hidden_dim*heads, output_dim), stored as (in, out)
        "wfc":   sc * jax.random.normal(ks[9], (hidden_dim * num_heads, output_dim), jnp.float32),
        "bfc":   jnp.zeros((1, output_dim), jnp.float32),
    }

    out = gat_model_forward(x, adj, params)
    out = jax.block_until_ready(out)
    assert out.shape == (N, output_dim)
    assert bool(jnp.all(jnp.isfinite(out)))

    # bf16 MXU path vs f32 reference: expect ~1e-2 relative drift (documented).
    ref = gat_reference(x, adj, params)
    assert bool(jnp.allclose(out, ref, rtol=1e-1, atol=1e-2)), (
        float(jnp.max(jnp.abs(out - ref))))

    print("KERNEL_OK")
</pallas_src>

<mosaic_0001>
module attributes {stable_mosaic.version = 11 : i64} {
  func.func @gat_model_kernel(%arg0: memref<16x8xbf16, #tpu.memory_space<vmem>>, %arg1: memref<16x16xi8, #tpu.memory_space<vmem>>, %arg2: memref<8x34xbf16, #tpu.memory_space<vmem>>, %arg3: memref<1x32xf32, #tpu.memory_space<vmem>>, %arg4: memref<32x34xbf16, #tpu.memory_space<vmem>>, %arg5: memref<1x32xf32, #tpu.memory_space<vmem>>, %arg6: memref<32x128xbf16, #tpu.memory_space<vmem>>, %arg7: memref<1x128xf32, #tpu.memory_space<vmem>>, %arg8: memref<16x128xf32, #tpu.memory_space<vmem>>) attributes {dimension_semantics = [], scalar_prefetch = 0 : i64, scratch_operands = 0 : i64, tpu.core_type = #tpu.core_type<tc>} {
    %c0 = arith.constant 0 : index
    %c0_0 = arith.constant 0 : index
    %0 = vector.load %arg1[%c0, %c0_0] : memref<16x16xi8, #tpu.memory_space<vmem>>, vector<16x16xi8>
    %1 = arith.sitofp %0 : vector<16x16xi8> to vector<16x16xbf16>
    %cst = arith.constant 1.000000e+00 : bf16
    %2 = vector.broadcast %cst : bf16 to vector<16x16xbf16>
    %3 = arith.subf %1, %2 : vector<16x16xbf16>
    %cst_1 = arith.constant 1.000260e+30 : bf16
    %4 = vector.broadcast %cst_1 : bf16 to vector<16x16xbf16>
    %5 = arith.mulf %3, %4 : vector<16x16xbf16>
    %c0_2 = arith.constant 0 : index
    %c0_3 = arith.constant 0 : index
    %6 = vector.load %arg0[%c0_2, %c0_3] : memref<16x8xbf16, #tpu.memory_space<vmem>>, vector<16x8xbf16>
    %c0_4 = arith.constant 0 : index
    %c0_5 = arith.constant 0 : index
    %7 = vector.load %arg2[%c0_4, %c0_5] : memref<8x34xbf16, #tpu.memory_space<vmem>>, vector<8x34xbf16>
    %cst_6 = arith.constant dense<0.000000e+00> : vector<16x34xf32>
    %8 = tpu.matmul %6, %7, %cst_6 {dimension_numbers = #tpu.dot_dimension_numbers<[1], [0], [0], [1], [0, 0, 1, 1], [], []>} : vector<16x8xbf16>, vector<8x34xbf16>, vector<16x34xf32> -> vector<16x34xf32>
    %9 = vector.extract_strided_slice %8 {offsets = [0, 0], sizes = [16, 32], strides = [1, 1]} : vector<16x34xf32> to vector<16x32xf32>
    %10 = arith.truncf %9 : vector<16x32xf32> to vector<16x32xbf16>
    %11 = vector.extract_strided_slice %8 {offsets = [0, 32], sizes = [16, 1], strides = [1, 1]} : vector<16x34xf32> to vector<16x1xf32>
    %12 = vector.extract_strided_slice %8 {offsets = [0, 33], sizes = [16, 1], strides = [1, 1]} : vector<16x34xf32> to vector<16x1xf32>
    %13 = tpu.transpose %12, [1, 0] : vector<16x1xf32> -> vector<1x16xf32>
    %14 = vector.broadcast %11 : vector<16x1xf32> to vector<16x16xf32>
    %15 = vector.broadcast %13 : vector<1x16xf32> to vector<16x16xf32>
    %16 = arith.addf %14, %15 : vector<16x16xf32>
    %cst_7 = arith.constant 2.000000e-01 : f32
    %17 = vector.broadcast %cst_7 : f32 to vector<16x16xf32>
    %18 = arith.mulf %17, %16 : vector<16x16xf32>
    %19 = arith.maximumf %16, %18 : vector<16x16xf32>
    %20 = arith.extf %5 : vector<16x16xbf16> to vector<16x16xf32>
    %21 = arith.addf %19, %20 : vector<16x16xf32>
    %cst_8 = arith.constant dense<0xFF800000> : vector<16xf32>
    %22 = vector.multi_reduction <maximumf>, %21, %cst_8 [1] : vector<16x16xf32> to vector<16xf32>
    %23 = vector.shape_cast %22 : vector<16xf32> to vector<16x1xf32>
    %24 = vector.broadcast %23 : vector<16x1xf32> to vector<16x16xf32>
    %25 = arith.subf %21, %24 : vector<16x16xf32>
    %26 = math.exp %25 : vector<16x16xf32>
    %cst_9 = arith.constant dense<0.000000e+00> : vector<16xf32>
    %27 = vector.multi_reduction <add>, %26, %cst_9 [1] : vector<16x16xf32> to vector<16xf32>
    %28 = vector.shape_cast %27 : vector<16xf32> to vector<16x1xf32>
    %29 = tpu.reciprocal %28 {approx = true} : vector<16x1xf32> -> vector<16x1xf32>
    %30 = vector.broadcast %29 : vector<16x1xf32> to vector<16x16xf32>
    %31 = arith.mulf %26, %30 : vector<16x16xf32>
    %32 = arith.truncf %31 : vector<16x16xf32> to vector<16x16xbf16>
    %cst_10 = arith.constant dense<0.000000e+00> : vector<16x32xf32>
    %33 = tpu.matmul %32, %10, %cst_10 {dimension_numbers = #tpu.dot_dimension_numbers<[1], [0], [0], [1], [0, 0, 1, 1], [], []>} : vector<16x16xbf16>, vector<16x32xbf16>, vector<16x32xf32> -> vector<16x32xf32>
    %c0_11 = arith.constant 0 : index
    %c0_12 = arith.constant 0 : index
    %34 = vector.load %arg3[%c0_11, %c0_12] : memref<1x32xf32, #tpu.memory_space<vmem>>, vector<1x32xf32>
    %35 = vector.broadcast %34 : vector<1x32xf32> to vector<16x32xf32>
    %36 = arith.addf %33, %35 : vector<16x32xf32>
    %cst_13 = arith.constant 0.000000e+00 : f32
    %37 = vector.broadcast %cst_13 : f32 to vector<16x32xf32>
    %38 = arith.maximumf %36, %37 : vector<16x32xf32>
    %39 = arith.truncf %38 : vector<16x32xf32> to vector<16x32xbf16>
    %c0_14 = arith.constant 0 : index
    %c0_15 = arith.constant 0 : index
    %40 = vector.load %arg4[%c0_14, %c0_15] : memref<32x34xbf16, #tpu.memory_space<vmem>>, vector<32x34xbf16>
    %cst_16 = arith.constant dense<0.000000e+00> : vector<16x34xf32>
    %41 = tpu.matmul %39, %40, %cst_16 {dimension_numbers = #tpu.dot_dimension_numbers<[1], [0], [0], [1], [0, 0, 1, 1], [], []>} : vector<16x32xbf16>, vector<32x34xbf16>, vector<16x34xf32> -> vector<16x34xf32>
    %42 = vector.extract_strided_slice %41 {offsets = [0, 0], sizes = [16, 32], strides = [1, 1]} : vector<16x34xf32> to vector<16x32xf32>
    %43 = arith.truncf %42 : vector<16x32xf32> to vector<16x32xbf16>
    %44 = vector.extract_strided_slice %41 {offsets = [0, 32], sizes = [16, 1], strides = [1, 1]} : vector<16x34xf32> to vector<16x1xf32>
    %45 = vector.extract_strided_slice %41 {offsets = [0, 33], sizes = [16, 1], strides = [1, 1]} : vector<16x34xf32> to vector<16x1xf32>
    %46 = tpu.transpose %45, [1, 0] : vector<16x1xf32> -> vector<1x16xf32>
    %47 = vector.broadcast %44 : vector<16x1xf32> to vector<16x16xf32>
    %48 = vector.broadcast %46 : vector<1x16xf32> to vector<16x16xf32>
    %49 = arith.addf %47, %48 : vector<16x16xf32>
    %cst_17 = arith.constant 2.000000e-01 : f32
    %50 = vector.broadcast %cst_17 : f32 to vector<16x16xf32>
    %51 = arith.mulf %50, %49 : vector<16x16xf32>
    %52 = arith.maximumf %49, %51 : vector<16x16xf32>
    %53 = arith.extf %5 : vector<16x16xbf16> to vector<16x16xf32>
    %54 = arith.addf %52, %53 : vector<16x16xf32>
    %cst_18 = arith.constant dense<0xFF800000> : vector<16xf32>
    %55 = vector.multi_reduction <maximumf>, %54, %cst_18 [1] : vector<16x16xf32> to vector<16xf32>
    %56 = vector.shape_cast %55 : vector<16xf32> to vector<16x1xf32>
    %57 = vector.broadcast %56 : vector<16x1xf32> to vector<16x16xf32>
    %58 = arith.subf %54, %57 : vector<16x16xf32>
    %59 = math.exp %58 : vector<16x16xf32>
    %cst_19 = arith.constant dense<0.000000e+00> : vector<16xf32>
    %60 = vector.multi_reduction <add>, %59, %cst_19 [1] : vector<16x16xf32> to vector<16xf32>
    %61 = vector.shape_cast %60 : vector<16xf32> to vector<16x1xf32>
    %62 = tpu.reciprocal %61 {approx = true} : vector<16x1xf32> -> vector<16x1xf32>
    %63 = vector.broadcast %62 : vector<16x1xf32> to vector<16x16xf32>
    %64 = arith.mulf %59, %63 : vector<16x16xf32>
    %65 = arith.truncf %64 : vector<16x16xf32> to vector<16x16xbf16>
    %cst_20 = arith.constant dense<0.000000e+00> : vector<16x32xf32>
    %66 = tpu.matmul %65, %43, %cst_20 {dimension_numbers = #tpu.dot_dimension_numbers<[1], [0], [0], [1], [0, 0, 1, 1], [], []>} : vector<16x16xbf16>, vector<16x32xbf16>, vector<16x32xf32> -> vector<16x32xf32>
    %c0_21 = arith.constant 0 : index
    %c0_22 = arith.constant 0 : index
    %67 = vector.load %arg5[%c0_21, %c0_22] : memref<1x32xf32, #tpu.memory_space<vmem>>, vector<1x32xf32>
    %68 = vector.broadcast %67 : vector<1x32xf32> to vector<16x32xf32>
    %69 = arith.addf %66, %68 : vector<16x32xf32>
    %cst_23 = arith.constant 0.000000e+00 : f32
    %70 = vector.broadcast %cst_23 : f32 to vector<16x32xf32>
    %71 = arith.maximumf %69, %70 : vector<16x32xf32>
    %72 = arith.truncf %71 : vector<16x32xf32> to vector<16x32xbf16>
    %c0_24 = arith.constant 0 : index
    %c0_25 = arith.constant 0 : index
    %73 = vector.load %arg6[%c0_24, %c0_25] : memref<32x128xbf16, #tpu.memory_space<vmem>>, vector<32x128xbf16>
    %cst_26 = arith.constant dense<0.000000e+00> : vector<16x128xf32>
    %74 = tpu.matmul %72, %73, %cst_26 {dimension_numbers = #tpu.dot_dimension_numbers<[1], [0], [0], [1], [0, 0, 1, 1], [], []>} : vector<16x32xbf16>, vector<32x128xbf16>, vector<16x128xf32> -> vector<16x128xf32>
    %c0_27 = arith.constant 0 : index
    %c0_28 = arith.constant 0 : index
    %75 = vector.load %arg7[%c0_27, %c0_28] : memref<1x128xf32, #tpu.memory_space<vmem>>, vector<1x128xf32>
    %76 = vector.broadcast %75 : vector<1x128xf32> to vector<16x128xf32>
    %77 = arith.addf %74, %76 : vector<16x128xf32>
    %c0_29 = arith.constant 0 : index
    %c0_30 = arith.constant 0 : index
    %78 = vector.load %arg8[%c0_29, %c0_30] : memref<16x128xf32, #tpu.memory_space<vmem>>, vector<16x128xf32>
    tpu.vector_store %arg8[%c0_29, %c0_30], %77 {strides = array<i32>} : memref<16x128xf32, #tpu.memory_space<vmem>>, vector<16x128xf32>,
    return
  }
}

</mosaic_0001>

<llo_original>
// kernel: tpu_custom_call.1
$region0: #{tpu_custom_call.1}
  #allocation0 [shape = 'u32[]', space=smem, size = 0x4, offset = 0x4, fixed_abs, tag = 'smem constant byte address 0x4 - core index']
  #allocation1 [shape = 'u32[72,128]{1,0:T(1,128)}', space=vmem, size = 0x9000, scoped, tag = 'internal scratch']
  %s0 = inlined_call_operand.vmem [shape: bf16[16,8], index: 0, kind: input, shape index: {}]
  %s1 = inlined_call_operand.hbm [shape: s8[16,16], index: 1, kind: input, shape index: {}]
  %s2 = inlined_call_operand.hbm [shape: bf16[8,34], index: 2, kind: input, shape index: {}]
  %s3 = inlined_call_operand.vmem [shape: f32[1,32], index: 3, kind: input, shape index: {}]
  %s4 = inlined_call_operand.hbm [shape: bf16[32,34], index: 4, kind: input, shape index: {}]
  %s5 = inlined_call_operand.hbm [shape: f32[1,32], index: 5, kind: input, shape index: {}]
  %s6 = inlined_call_operand.vmem [shape: bf16[32,128], index: 6, kind: input, shape index: {}]
  %s7 = inlined_call_operand.vmem [shape: f32[1,128], index: 7, kind: input, shape index: {}]
  %s8 = inlined_call_operand.hbm [shape: f32[16,128], index: 8, kind: output, shape index: {}]
  %s9 = sld [smem:[#allocation0]]
  $region58: #{tpu_custom_call.1} parent=0
    _
  %s11 = ssub.s32 1, %s9
  %s12 = scalar_select 0, %s11, %s9
  $region1: #{tpu_custom_call.1} parent=0
    #allocation2 [shape = 'u8[2048]{0}', space=vmem, size = 0x800, scoped, tag = 'input window, operand 1, single buffered']
    #allocation3 [shape = 's32[1]{0}', space=sflag, size = 0x4, scoped, tag = 'scoped memory for tpu_custom_call.1']
    #allocation4 [shape = 's32[1]{0}', space=sflag, size = 0x4, scoped, tag = 'scoped memory for tpu_custom_call.1']
    #allocation5 [shape = 'u8[2048]{0}', space=vmem, size = 0x800, scoped, tag = 'input window, operand 2, single buffered']
    #allocation6 [shape = 's32[1]{0}', space=sflag, size = 0x4, scoped, tag = 'scoped memory for tpu_custom_call.1']
    #allocation7 [shape = 'u8[8192]{0}', space=vmem, size = 0x2000, scoped, tag = 'input window, operand 4, single buffered']
    #allocation8 [shape = 'u8[512]{0}', space=vmem, size = 0x400, scoped, tag = 'input window, operand 5, single buffered']
    #allocation9 [shape = 's32[1]{0}', space=sflag, size = 0x4, scoped, tag = 'scoped memory for tpu_custom_call.1']
    #allocation10 [shape = 'u8[8192]{0}', space=vmem, size = 0x2000, scoped, tag = 'output window, operand 0, single buffered']
    %13 = vsyncpa [#allocation3], 0
    %14 = vsyncpa [#allocation6], 0
    %15 = vsyncpa [#allocation9], 0
    %16 = vsyncpa [#allocation4], 0
    // Predicated region
    $region2: #{tpu_custom_call.1} parent=1 // pred_check
      _
    $region3: #{tpu_custom_call.1} parent=1 // pred_check_branch
      %18 = sbr.rel (0) target = $region5
    $region4: #{tpu_custom_call.1} parent=1 // pred_region
      _
    $region5: #{tpu_custom_call.1} parent=1 // pred_fallthru
      _
    // Predicated region
    $region6: #{tpu_custom_call.1} parent=1 // pred_check
      _
    $region7: #{tpu_custom_call.1} parent=1 // pred_check_branch
      %20 = sbr.rel (0) target = $region9
    $region8: #{tpu_custom_call.1} parent=1 // pred_region
      %22 = vsyncadd [#allocation3], 0
      %s23 = sshll.u32 %s1, 4
      %s24 = int_to_ptr.hbm [resolvable:$true] %s23
      %s25 = sshll.u32 [#allocation2], 4
      %s26 = int_to_ptr.vmem [resolvable:$true] %s25
      %31 = dma.hbm_to_vmem [thread:$0]  %s24, 64, %s26, [#allocation3], 32, 32, 2
    $region9: #{tpu_custom_call.1} parent=1 // pred_fallthru
      _
    // Predicated region
    $region10: #{tpu_custom_call.1} parent=1 // pred_check
      _
    $region11: #{tpu_custom_call.1} parent=1 // pred_check_branch
      %33 = sbr.rel (0) target = $region13
    $region12: #{tpu_custom_call.1} parent=1 // pred_region
      %35 = vsyncadd [#allocation6], 0
      %s37 = sshll.u32 %s2, 4
      %s38 = int_to_ptr.hbm [resolvable:$true] %s37
      %s39 = sshll.u32 [#allocation5], 4
      %s40 = int_to_ptr.vmem [resolvable:$true] %s39
      %42 = dma.hbm_to_vmem [thread:$0]  %s38, 64, %s40, [#allocation6]
    $region13: #{tpu_custom_call.1} parent=1 // pred_fallthru
      _
    // Predicated region
    $region14: #{tpu_custom_call.1} parent=1 // pred_check
      _
    $region15: #{tpu_custom_call.1} parent=1 // pred_check_branch
      %44 = sbr.rel (0) target = $region17
    $region16: #{tpu_custom_call.1} parent=1 // pred_region
      _
    $region17: #{tpu_custom_call.1} parent=1 // pred_fallthru
      _
    // Predicated region
    $region18: #{tpu_custom_call.1} parent=1 // pred_check
      _
    $region19: #{tpu_custom_call.1} parent=1 // pred_check_branch
      %46 = sbr.rel (0) target = $region21
    $region20: #{tpu_custom_call.1} parent=1 // pred_region
      %48 = vsyncadd [#allocation6], 0
      %s49 = sshll.u32 %s4, 4
      %s50 = int_to_ptr.hbm [resolvable:$true] %s49
      %s51 = sshll.u32 [#allocation7], 4
      %s52 = int_to_ptr.vmem [resolvable:$true] %s51
      %57 = dma.hbm_to_vmem [thread:$0]  %s50, 256, %s52, [#allocation6], 64, 64, 4
    $region21: #{tpu_custom_call.1} parent=1 // pred_fallthru
      _
    // Predicated region
    $region22: #{tpu_custom_call.1} parent=1 // pred_check
      _
    $region23: #{tpu_custom_call.1} parent=1 // pred_check_branch
      %59 = sbr.rel (0) target = $region25
    $region24: #{tpu_custom_call.1} parent=1 // pred_region
      %61 = vsyncadd [#allocation9], 0
      %s63 = sshll.u32 %s5, 4
      %s64 = int_to_ptr.hbm [resolvable:$true] %s63
      %s65 = sshll.u32 [#allocation8], 4
      %s66 = int_to_ptr.vmem [resolvable:$true] %s65
      %68 = dma.hbm_to_vmem [thread:$0]  %s64, 16, %s66, [#allocation9]
    $region25: #{tpu_custom_call.1} parent=1 // pred_fallthru
      _
    // Predicated region
    $region26: #{tpu_custom_call.1} parent=1 // pred_check
      _
    $region27: #{tpu_custom_call.1} parent=1 // pred_check_branch
      %70 = sbr.rel (0) target = $region29
    $region28: #{tpu_custom_call.1} parent=1 // pred_region
      _
    $region29: #{tpu_custom_call.1} parent=1 // pred_fallthru
      _
    // Predicated region
    $region30: #{tpu_custom_call.1} parent=1 // pred_check
      _
    $region31: #{tpu_custom_call.1} parent=1 // pred_check_branch
      %72 = sbr.rel (0) target = $region33
    $region32: #{tpu_custom_call.1} parent=1 // pred_region
      _
    $region33: #{tpu_custom_call.1} parent=1 // pred_fallthru
      _
    // Predicated region
    $region34: #{tpu_custom_call.1} parent=1 // pred_check
      _
    $region35: #{tpu_custom_call.1} parent=1 // pred_check_branch
      %74 = sbr.rel (0) target = $region37
    $region36: #{tpu_custom_call.1} parent=1 // pred_region
      %76 = dma.done [#allocation3], 64
    $region37: #{tpu_custom_call.1} parent=1 // pred_fallthru
      _
    // Predicated region
    $region38: #{tpu_custom_call.1} parent=1 // pred_check
      _
    $region39: #{tpu_custom_call.1} parent=1 // pred_check_branch
      %78 = sbr.rel (0) target = $region41
    $region40: #{tpu_custom_call.1} parent=1 // pred_region
      %80 = dma.done [#allocation6], 64
    $region41: #{tpu_custom_call.1} parent=1 // pred_fallthru
      _
    // Predicated region
    $region42: #{tpu_custom_call.1} parent=1 // pred_check
      _
    $region43: #{tpu_custom_call.1} parent=1 // pred_check_branch
      %82 = sbr.rel (0) target = $region45
    $region44: #{tpu_custom_call.1} parent=1 // pred_region
      %84 = dma.done [#allocation6], 256
    $region45: #{tpu_custom_call.1} parent=1 // pred_fallthru
      _
    // Predicated region
    $region46: #{tpu_custom_call.1} parent=1 // pred_check
      _
    $region47: #{tpu_custom_call.1} parent=1 // pred_check_branch
      %86 = sbr.rel (0) target = $region49
    $region48: #{tpu_custom_call.1} parent=1 // pred_region
      %88 = dma.done [#allocation9], 16
    $region49: #{tpu_custom_call.1} parent=1 // pred_fallthru
      _
    %v90 = vld [vmem:[#allocation2] sm:$0x3]
    %v91 = vld [vmem:[#allocation2 + $0x2] sm:$0x3]
    %v92 = vunpack.c.0.s8 %v90
    %v93 = vunpack.c.0.s8 %v91
    %v94 = vcvt.s32.f32 %v92
    %v95 = vcvt.s32.f32 %v93
    %v96 = vpack.c.bf16 %v94, %v94
    %v97 = vpack.c.bf16 %v95, %v95
    %v98 = vunpack.c.l.bf16 %v96
    %v99 = vunpack.c.l.bf16 %v97
    %v100 = vsub.f32 %v98, 1.0
    %v101 = vsub.f32 %v99, 1.0
    %v102 = vpack.c.bf16 %v100, %v100
    %v103 = vpack.c.bf16 %v101, %v101
    %v104 = vunpack.c.l.bf16 %v102
    %v105 = vunpack.c.l.bf16 %v103
    %v106 = vmul.f32 %v104, 1.00025555e+30
    %v107 = vmul.f32 %v105, 1.00025555e+30
    %v108 = vpack.c.bf16 %v106, %v106
    %v109 = vpack.c.bf16 %v107, %v107
    %v110 = vld [vmem:[%s0] sm:$0xf]
    %v111 = vld [vmem:[%s0 + $0x4] sm:$0xf]
    %v112 = vld [vmem:[#allocation5] sm:$0xf]
    %v115 = vunpack.c.l.b16 %v110
    %v116 = vunpack.c.l.b16 %v111
    %v117 = vpack.c.b16 %v116, %v115
    %vm118 = vcmask 64512
    %v120 = vsel %vm118, %v117, 0
    %vm122 = vcmask 1043456
    %v124 = vsel %vm122, %v112, 0
    %126 = vmatpush.bf16.msra.mxu0 0
    %127 = vmatpush.bf16.msra.mxu0 0
    %128 = vmatpush.bf16.msra.mxu0 0
    %129 = vmatpush.bf16.msra.mxu0 0
    %130 = vmatpush.bf16.msra.mxu0 0
    %131 = vmatpush.bf16.msra.mxu0 0
    %132 = vmatpush.bf16.msra.mxu0 0
    %133 = vmatpush.bf16.msra.mxu0 %v124
    %134 = vmatmul.bf16.gmra.mxu0 %v120
    %v135 = vpop.f32.mrf.mxu0
    %v136 = vadd.f32 0.0, %v135
    %v137 = vpop.f32.mrf.mxu0
    %v138 = vadd.f32 0.0, %v137
    %139 = vdwg.mxu0
    %v140 = vpack.c.bf16 %v138, %v136
    %143 = vrot.lane.b32.xlu0 %v136, 95
    %v144 = vpop.permute.xlu0 %143
    %145 = vrot.lane.b32.xlu0 %v138, 95
    %v146 = vpop.permute.xlu0 %145
    %149 = vxpose.xlu0.b32.start [1/16] %v144, 128
    %150 = vxpose.xlu0.b32.cont [2/16] %v146, 128
    %151 = vxpose.xlu0.b32.cont [3/16] 0.0, 128
    %152 = vxpose.xlu0.b32.cont [4/16] 0.0, 128
    %153 = vxpose.xlu0.b32.cont [5/16] 0.0, 128
    %154 = vxpose.xlu0.b32.cont [6/16] 0.0, 128
    %155 = vxpose.xlu0.b32.cont [7/16] 0.0, 128
    %156 = vxpose.xlu0.b32.cont [8/16] 0.0, 128
    %157 = vxpose.xlu0.b32.cont [9/16] 0.0, 128
    %158 = vxpose.xlu0.b32.cont [10/16] 0.0, 128
    %159 = vxpose.xlu0.b32.cont [11/16] 0.0, 128
    %160 = vxpose.xlu0.b32.cont [12/16] 0.0, 128
    %161 = vxpose.xlu0.b32.cont [13/16] 0.0, 128
    %162 = vxpose.xlu0.b32.cont [14/16] 0.0, 128
    %163 = vxpose.xlu0.b32.cont [15/16] 0.0, 128
    %164 = vxpose.xlu0.b32.end [16/16] 0.0, 128
    %v165 = vpop.trf.xlu0
    %v166 = vpop.trf.xlu0
    %v167 = vpop.trf.xlu0
    %v168 = vpop.trf.xlu0
    %v169 = vpop.trf.xlu0
    %v170 = vpop.trf.xlu0
    %v171 = vpop.trf.xlu0
    %v172 = vpop.trf.xlu0
    %v173 = vpop.trf.xlu0
    %v174 = vpop.trf.xlu0
    %v175 = vpop.trf.xlu0
    %v176 = vpop.trf.xlu0
    %v177 = vpop.trf.xlu0
    %v178 = vpop.trf.xlu0
    %v179 = vpop.trf.xlu0
    %v180 = vpop.trf.xlu0
    %181 = vset.pattern.permute.xlu0 32
    %182 = vperm.xlu0 %181, %v136
    %v183 = vpop.permute.xlu0 %182
    %185 = vset.pattern.permute.xlu0 32
    %186 = vperm.xlu0 %185, %v138
    %v187 = vpop.permute.xlu0 %186
    %v189 = vperm.slane %v165, 0
    %v190 = vadd.f32 %v183, %v189
    %v191 = vadd.f32 %v187, %v189
    %v192 = vmul.f32 %v190, 0.2
    %v193 = vmul.f32 %v191, 0.2
    %v194 = vmax.f32 %v190, %v192
    %v195 = vmax.f32 %v191, %v193
    %v196 = vunpack.c.l.bf16 %v108
    %v197 = vunpack.c.l.bf16 %v109
    %v198 = vadd.f32 %v194, %v196
    %v199 = vadd.f32 %v195, %v197
    %vm200 = vcmask 130048
    %v201 = vsel %vm200, %v198, -inf
    %202 = vmax.xlane.f32.xlu0 %v201
    %v203 = vpop.xlane.xlu0 %202
    %v204 = vsel %vm200, %v199, -inf
    %205 = vmax.xlane.f32.xlu0 %v204
    %v206 = vpop.xlane.xlu0 %205
    %v207 = vsub.f32 %v198, %v203
    %v208 = vsub.f32 %v199, %v206
    %v209 = vmul.f32 %v207, 1.442695
    %v210 = vpow.pop %v209
    %v211 = vmul.f32 %v208, 1.442695
    %v212 = vpow.pop %v211
    %v213 = vsel %vm200, %v210, 0.0
    %214 = vadd.xlane.f32.xlu0 %v213
    %v215 = vpop.xlane.xlu0 %214
    %v216 = vsel %vm200, %v212, 0.0
    %217 = vadd.xlane.f32.xlu0 %v216
    %v218 = vpop.xlane.xlu0 %217
    %v219 = vrcp.pop %v215
    %v220 = vrcp.pop %v218
    %v221 = vmul.f32 %v210, %v219
    %v222 = vmul.f32 %v212, %v220
    %v223 = vpack.c.bf16 %v222, %v221
    %v224 = vld [vmem:[%s3] sm:$0x1]
    %v226 = vperm.slane %v224, 0
    %v229 = vsel %vm200, %v223, 0
    %231 = vmatpush.bf16.msra.mxu0 0
    %232 = vmatpush.bf16.msra.mxu0 0
    %233 = vmatpush.bf16.msra.mxu0 0
    %234 = vmatpush.bf16.msra.mxu0 0
    %235 = vmatpush.bf16.msra.mxu0 0
    %236 = vmatpush.bf16.msra.mxu0 0
    %237 = vmatpush.bf16.msra.mxu0 0
    %238 = vmatpush.bf16.msra.mxu0 %v140
    %239 = vmatmul.bf16.gmra.mxu0 %v229
    %v240 = vpop.f32.mrf.mxu0
    %v241 = vadd.f32 %v226, %v240
    %v242 = vpop.f32.mrf.mxu0
    %v243 = vadd.f32 %v226, %v242
    %244 = vdwg.mxu0
    %v245 = vmax.f32 %v241, 0.0
    %v246 = vmax.f32 %v243, 0.0
    %v247 = vpack.c.bf16 %v246, %v245
    %v248 = vld [vmem:[#allocation7] sm:$0xf]
    %v249 = vld [vmem:[#allocation7 + $0x4] sm:$0xf]
    %v250 = vld [vmem:[#allocation7 + $0x8] sm:$0xf]
    %v251 = vld [vmem:[#allocation7 + $0xc] sm:$0xf]
    %v256 = vunpack.c.l.b16 %v248
    %v257 = vunpack.c.l.b16 %v249
    %v258 = vunpack.c.l.b16 %v250
    %v259 = vunpack.c.l.b16 %v251
    %v260 = vpack.c.b16 %v257, %v256
    %v261 = vpack.c.b16 %v259, %v258
    %vm264 = vcmask 261120
    %v266 = vsel %vm264, %v247, 0
    %268 = vmatpush.bf16.msra.mxu0 0
    %269 = vmatpush.bf16.msra.mxu0 0
    %270 = vmatpush.bf16.msra.mxu0 0
    %271 = vmatpush.bf16.msra.mxu0 0
    %272 = vmatpush.bf16.msra.mxu0 0
    %273 = vmatpush.bf16.msra.mxu0 0
    %274 = vmatpush.bf16.msra.mxu0 %v261
    %275 = vmatpush.bf16.msra.mxu0 %v260
    %276 = vmatmul.bf16.gmra.mxu0 %v266
    %v277 = vpop.f32.mrf.mxu0
    %v278 = vadd.f32 0.0, %v277
    %v279 = vpop.f32.mrf.mxu0
    %v280 = vadd.f32 0.0, %v279
    %281 = vdwg.mxu0
    %v282 = vpack.c.bf16 %v280, %v278
    %285 = vrot.lane.b32.xlu0 %v278, 95
    %v286 = vpop.permute.xlu0 %285
    %287 = vrot.lane.b32.xlu0 %v280, 95
    %v288 = vpop.permute.xlu0 %287
    %291 = vxpose.xlu0.b32.start [1/16] %v286, 128
    %292 = vxpose.xlu0.b32.cont [2/16] %v288, 128
    %293 = vxpose.xlu0.b32.cont [3/16] 0.0, 128
    %294 = vxpose.xlu0.b32.cont [4/16] 0.0, 128
    %295 = vxpose.xlu0.b32.cont [5/16] 0.0, 128
    %296 = vxpose.xlu0.b32.cont [6/16] 0.0, 128
    %297 = vxpose.xlu0.b32.cont [7/16] 0.0, 128
    %298 = vxpose.xlu0.b32.cont [8/16] 0.0, 128
    %299 = vxpose.xlu0.b32.cont [9/16] 0.0, 128
    %300 = vxpose.xlu0.b32.cont [10/16] 0.0, 128
    %301 = vxpose.xlu0.b32.cont [11/16] 0.0, 128
    %302 = vxpose.xlu0.b32.cont [12/16] 0.0, 128
    %303 = vxpose.xlu0.b32.cont [13/16] 0.0, 128
    %304 = vxpose.xlu0.b32.cont [14/16] 0.0, 128
    %305 = vxpose.xlu0.b32.cont [15/16] 0.0, 128
    %306 = vxpose.xlu0.b32.end [16/16] 0.0, 128
    %v307 = vpop.trf.xlu0
    %v308 = vpop.trf.xlu0
    %v309 = vpop.trf.xlu0
    %v310 = vpop.trf.xlu0
    %v311 = vpop.trf.xlu0
    %v312 = vpop.trf.xlu0
    %v313 = vpop.trf.xlu0
    %v314 = vpop.trf.xlu0
    %v315 = vpop.trf.xlu0
    %v316 = vpop.trf.xlu0
    %v317 = vpop.trf.xlu0
    %v318 = vpop.trf.xlu0
    %v319 = vpop.trf.xlu0
    %v320 = vpop.trf.xlu0
    %v321 = vpop.trf.xlu0
    %v322 = vpop.trf.xlu0
    %323 = vset.pattern.permute.xlu0 32
    %324 = vperm.xlu0 %323, %v278
    %v325 = vpop.permute.xlu0 %324
    %327 = vset.pattern.permute.xlu0 32
    %328 = vperm.xlu0 %327, %v280
    %v329 = vpop.permute.xlu0 %328
    %v331 = vperm.slane %v307, 0
    %v332 = vadd.f32 %v325, %v331
    %v333 = vadd.f32 %v329, %v331
    %v334 = vmul.f32 %v332, 0.2
    %v335 = vmul.f32 %v333, 0.2
    %v336 = vmax.f32 %v332, %v334
    %v337 = vmax.f32 %v333, %v335
    %v338 = vadd.f32 %v336, %v196
    %v339 = vadd.f32 %v337, %v197
    %v340 = vsel %vm200, %v338, -inf
    %341 = vmax.xlane.f32.xlu0 %v340
    %v342 = vpop.xlane.xlu0 %341
    %v343 = vsel %vm200, %v339, -inf
    %344 = vmax.xlane.f32.xlu0 %v343
    %v345 = vpop.xlane.xlu0 %344
    %v346 = vsub.f32 %v338, %v342
    %v347 = vsub.f32 %v339, %v345
    %v348 = vmul.f32 %v346, 1.442695
    %v349 = vpow.pop %v348
    %v350 = vmul.f32 %v347, 1.442695
    %v351 = vpow.pop %v350
    %v352 = vsel %vm200, %v349, 0.0
    %353 = vadd.xlane.f32.xlu0 %v352
    %v354 = vpop.xlane.xlu0 %353
    %v355 = vsel %vm200, %v351, 0.0
    %356 = vadd.xlane.f32.xlu0 %v355
    %v357 = vpop.xlane.xlu0 %356
    %v358 = vrcp.pop %v354
    %v359 = vrcp.pop %v357
    %v360 = vmul.f32 %v349, %v358
    %v361 = vmul.f32 %v351, %v359
    %v362 = vpack.c.bf16 %v361, %v360
    %v363 = vld [vmem:[#allocation8] sm:$0x1]
    %v365 = vperm.slane %v363, 0
    %v368 = vsel %vm200, %v362, 0
    %370 = vmatpush.bf16.msra.mxu0 0
    %371 = vmatpush.bf16.msra.mxu0 0
    %372 = vmatpush.bf16.msra.mxu0 0
    %373 = vmatpush.bf16.msra.mxu0 0
    %374 = vmatpush.bf16.msra.mxu0 0
    %375 = vmatpush.bf16.msra.mxu0 0
    %376 = vmatpush.bf16.msra.mxu0 0
    %377 = vmatpush.bf16.msra.mxu0 %v282
    %378 = vmatmul.bf16.gmra.mxu0 %v368
    %v379 = vpop.f32.mrf.mxu0
    %v380 = vadd.f32 %v365, %v379
    %v381 = vpop.f32.mrf.mxu0
    %v382 = vadd.f32 %v365, %v381
    %383 = vdwg.mxu0
    %v384 = vmax.f32 %v380, 0.0
    %v385 = vmax.f32 %v382, 0.0
    %v386 = vpack.c.bf16 %v385, %v384
    %v387 = vld [vmem:[%s6] sm:$0xf]
    %v388 = vld [vmem:[%s6 + $0x4] sm:$0xf]
    %v389 = vld [vmem:[%s6 + $0x8] sm:$0xf]
    %v390 = vld [vmem:[%s6 + $0xc] sm:$0xf]
    %v391 = vld [vmem:[%s7] sm:$0x1]
    %v393 = vperm.slane %v391, 0
    %v399 = vunpack.c.l.b16 %v387
    %v400 = vunpack.c.l.b16 %v388
    %v401 = vunpack.c.l.b16 %v389
    %v402 = vunpack.c.l.b16 %v390
    %v403 = vpack.c.b16 %v400, %v399
    %v404 = vpack.c.b16 %v402, %v401
    %v408 = vsel %vm264, %v386, 0
    %410 = vmatpush.bf16.msra.mxu0 0
    %411 = vmatpush.bf16.msra.mxu0 0
    %412 = vmatpush.bf16.msra.mxu0 0
    %413 = vmatpush.bf16.msra.mxu0 0
    %414 = vmatpush.bf16.msra.mxu0 0
    %415 = vmatpush.bf16.msra.mxu0 0
    %416 = vmatpush.bf16.msra.mxu0 %v404
    %417 = vmatpush.bf16.msra.mxu0 %v403
    %418 = vmatmul.bf16.gmra.mxu0 %v408
    %v419 = vpop.f32.mrf.mxu0
    %v420 = vadd.f32 %v393, %v419
    %v421 = vpop.f32.mrf.mxu0
    %v422 = vadd.f32 %v393, %v421
    %423 = vdwg.mxu0
    %424 = vst [vmem:[#allocation10] sm:$0xff] %v420
    %425 = vst [vmem:[#allocation10 + $0x8] sm:$0xff] %v422
    // Predicated region
    $region50: #{tpu_custom_call.1} parent=1 // pred_check
      _
    $region51: #{tpu_custom_call.1} parent=1 // pred_check_branch
      %427 = sbr.rel (0) target = $region53
    $region52: #{tpu_custom_call.1} parent=1 // pred_region
      %429 = vsyncadd [#allocation4], 0
      %s430 = sshll.u32 [#allocation10], 4
      %s431 = int_to_ptr.vmem [resolvable:$true] %s430
      %s432 = sshll.u32 %s8, 4
      %s433 = int_to_ptr.hbm [resolvable:$true] %s432
      %438 = dma.vmem_to_hbm [thread:$0]  %s431, 256, %s433, [#allocation4], 128, 128, 8
    $region53: #{tpu_custom_call.1} parent=1 // pred_fallthru
      _
    // Predicated region
    $region54: #{tpu_custom_call.1} parent=1 // pred_check
      _
    $region55: #{tpu_custom_call.1} parent=1 // pred_check_branch
      %440 = sbr.rel (0) target = $region57
    $region56: #{tpu_custom_call.1} parent=1 // pred_region
      %442 = dma.done [#allocation4], 256
    $region57: #{tpu_custom_call.1} parent=1 // pred_fallthru
      _
    %443 = vsyncpa [#allocation3], 1
    %444 = vsyncpa [#allocation6], 1
    %445 = vsyncpa [#allocation9], 1
    %446 = vsyncpa [#allocation4], 1

</llo_original>
